<compile_context>
chip_gen: v7x
topology: tpu7x:2x2x1
jax: 0.10.0
libtpu: 0.0.40
codegen_flags: <defaults>
</compile_context>

<pallas_src>
import math

import jax
import jax.numpy as jnp
from jax import lax
from jax.experimental import pallas as pl
from jax.experimental.pallas import tpu as pltpu

LANE = 128      # lane width (last axis)
SUBLANE = 8     # f32 sublane width (second-to-last axis)


def _round_up(x, m):
    return (x + m - 1) // m * m


def _pad2d(a, rows, cols):
    r, c = a.shape
    if rows == r and cols == c:
        return a
    return jnp.pad(a, ((0, rows - r), (0, cols - c)))


def _nbytes(a):
    return int(a.size) * a.dtype.itemsize


# ---------------------------------------------------------------------------
# Fused kernel: all hidden layers + latent projection (+ optional L2 normalize)
# ---------------------------------------------------------------------------

def _make_fused_kernel(num_hidden, normalize, mxu_dtype):
    def kernel(x_ref, *refs):
        # refs = (w1, shift1, w2, shift2, ..., w_latent, o_ref)
        o_ref = refs[-1]
        h = x_ref[...]                                            # (tb, d_in) f32
        for li in range(num_hidden):
            w_ref = refs[2 * li]
            s_ref = refs[2 * li + 1]
            # bf16 matmul inputs (MXU-native on v5e/v6e/v7x), f32 accumulate,
            # f32 epilogue (v5e has no bf16 VPU/EUP).
            h = jnp.dot(h.astype(mxu_dtype), w_ref[...],
                        preferred_element_type=jnp.float32)
            h = jnp.maximum(h + s_ref[...], 0.0)                  # folded bias+BN, ReLU
        wl_ref = refs[2 * num_hidden]
        z = jnp.dot(h.astype(mxu_dtype), wl_ref[...],
                    preferred_element_type=jnp.float32)
        if normalize:
            sumsq = jnp.sum(z * z, axis=-1, keepdims=True)
            # 1/max(||z||, 1e-12) == rsqrt(max(||z||^2, 1e-24)); rsqrt -> EUP slot
            z = z * lax.rsqrt(jnp.maximum(sumsq, 1e-24))
        o_ref[...] = z.astype(o_ref.dtype)
    return kernel


def simple_encoder_forward(fused, x, normalize_output=False, *,
                           batch_tile=1024, return_padded=False):
    """Run the fused forward. `fused` comes from fuse_params(). x: (B, in_channel)."""
    B, d_in = x.shape
    assert d_in == fused["in_channel"], (d_in, fused["in_channel"])
    l_pad = fused["latent_pad"]
    latent_dim = fused["latent_dim"]
    num_hidden = len(fused["hidden"])
    mxu_dtype = fused["hidden"][0][0].dtype

    # --- adaptive batch tiling ------------------------------------------------
    # Equalize tile sizes so padding waste stays below one tile (B=513 no longer
    # doubles the work), and use >=2 grid steps when possible so the "parallel"
    # batch axis actually spans both v7x TensorCores.
    b_pad8 = _round_up(B, SUBLANE)
    tb_max = _round_up(min(batch_tile, b_pad8), SUBLANE)
    n_tiles = pl.cdiv(b_pad8, tb_max)
    if b_pad8 >= 2 * SUBLANE:
        n_tiles = max(n_tiles, 2)
    tb = _round_up(pl.cdiv(b_pad8, n_tiles), SUBLANE)
    b_pad = n_tiles * tb

    # Only the batch dim is padded; the feature dim keeps its true width
    # (block last dim == full array dim satisfies the (8,128) rule).
    x_p = _pad2d(x.astype(jnp.float32), b_pad, d_in)

    inputs = [x_p]
    for w_eff, shift_eff in fused["hidden"]:
        inputs += [w_eff, shift_eff]
    inputs.append(fused["latent_wt"])

    # --- explicit VMEM budget (v7x: 64 MiB physical per TC) --------------------
    w_bytes = (sum(_nbytes(w) + _nbytes(s) for w, s in fused["hidden"])
               + _nbytes(fused["latent_wt"]))
    max_feat = max([w.shape[1] for w, _ in fused["hidden"]] + [l_pad, d_in])
    vmem_est = (2 * tb * d_in * 4            # double-buffered input tile (f32)
                + 2 * tb * l_pad * 4         # double-buffered output tile (f32)
                + 2 * w_bytes                # conservative: 2 buffers even if Buffered(1) sticks
                + 4 * tb * max_feat * 4      # intermediate-activation headroom
                + (4 << 20))                 # compiler scratch margin
    vmem_limit = int(min(max(vmem_est, 16 << 20), 64 << 20))

    # --- cost hint for the XLA scheduler ---------------------------------------
    flops = 2 * b_pad * sum(w.shape[0] * w.shape[1] for w, _ in fused["hidden"])
    flops += 2 * b_pad * fused["latent_wt"].shape[0] * fused["latent_wt"].shape[1]
    bytes_accessed = _nbytes(x_p) + w_bytes + b_pad * l_pad * 4
    cost = pl.CostEstimate(flops=int(flops),
                           transcendentals=int(b_pad if normalize_output else 0),
                           bytes_accessed=int(bytes_accessed))

    kernel = _make_fused_kernel(num_hidden, normalize_output, mxu_dtype)

    def _call(single_buffer_weights):
        # Weights/shifts have a constant index_map -> never re-fetched; request a
        # single resident buffer to halve their VMEM footprint.
        w_mode = pl.Buffered(1) if single_buffer_weights else None
        in_specs = [pl.BlockSpec((tb, d_in), lambda i: (i, 0))]
        for w_eff, shift_eff in fused["hidden"]:
            in_specs.append(pl.BlockSpec(w_eff.shape, lambda i: (0, 0),
                                         pipeline_mode=w_mode))
            in_specs.append(pl.BlockSpec(shift_eff.shape, lambda i: (0, 0),
                                         pipeline_mode=w_mode))
        in_specs.append(pl.BlockSpec(fused["latent_wt"].shape, lambda i: (0, 0),
                                     pipeline_mode=w_mode))
        out = pl.pallas_call(
            kernel,
            out_shape=jax.ShapeDtypeStruct((b_pad, l_pad), jnp.float32),
            grid=(n_tiles,),
            in_specs=in_specs,
            out_specs=pl.BlockSpec((tb, l_pad), lambda i: (i, 0)),
            compiler_params=pltpu.CompilerParams(
                dimension_semantics=("parallel",),
                vmem_limit_bytes=vmem_limit),
            cost_estimate=cost,
        )(*inputs)
        return jax.block_until_ready(out)

    try:
        out = _call(True)
    except Exception:
        # Installed jax rejects single-buffer pipeline_mode -> default double buffering.
        out = _call(False)

    if return_padded:
        # Lane-dense (b_pad, latent_pad) block; consumer slices/ignores padding itself,
        # avoiding an extra HBM read+write of the output here.
        return out
    return out[:B, :latent_dim]


# ---------------------------------------------------------------------------
# Parameter construction (mirrors SimpleEncoder.__init__ / init_emb) + folding
# ---------------------------------------------------------------------------

def xavier_uniform(key, fan_in, fan_out):
    bound = math.sqrt(6.0 / (fan_in + fan_out))
    # stored transposed: (in, out) so forward is x @ Wt  (== x @ W.T in PyTorch)
    return jax.random.uniform(key, (fan_in, fan_out), jnp.float32, -bound, bound)


def init_params(key, in_channel, hidden_layers, latent_dim, bn_eps=1e-5):
    """Raw (unfolded, unpadded) parameters with PyTorch-init values."""
    params = {"hidden": [], "latent_wt": None, "bn_eps": bn_eps,
              "in_channel": in_channel, "latent_dim": latent_dim}
    dims = [in_channel] + list(hidden_layers)
    keys = jax.random.split(key, len(hidden_layers) + 1)
    for i, (din, dout) in enumerate(zip(dims[:-1], dims[1:])):
        params["hidden"].append({
            "wt": xavier_uniform(keys[i], din, dout),
            "b": jnp.zeros((1, dout), jnp.float32),            # bias filled with 0.0
            "gamma": jnp.ones((1, dout), jnp.float32),         # BN defaults at init
            "beta": jnp.zeros((1, dout), jnp.float32),
            "running_mean": jnp.zeros((1, dout), jnp.float32),
            "running_var": jnp.ones((1, dout), jnp.float32),
        })
    params["latent_wt"] = xavier_uniform(keys[-1], hidden_layers[-1], latent_dim)
    return params


def fuse_params(params, weight_dtype=jnp.bfloat16):
    """Fold bias + eval-mode BN into weights, pad output feature dims to 128 lanes,
    cast weights to `weight_dtype` (bf16 -> MXU-native path). Shifts stay f32."""
    eps = params["bn_eps"]
    d_in = params["in_channel"]
    fused = {"hidden": [], "in_channel": d_in,
             "latent_dim": params["latent_dim"],
             "latent_pad": _round_up(params["latent_dim"], LANE)}
    prev = d_in   # layer-0 input keeps its true width (x is not lane-padded)
    for layer in params["hidden"]:
        din, dout = layer["wt"].shape
        scale = layer["gamma"] / jnp.sqrt(layer["running_var"] + eps)      # (1, dout)
        w_eff = layer["wt"] * scale                                        # column-wise fold
        shift_eff = layer["beta"] - layer["running_mean"] * scale + layer["b"] * scale
        dout_pad = _round_up(dout, LANE)
        # zero padding keeps padded lanes exactly 0 through relu and the next matmul
        fused["hidden"].append(
            (_pad2d(w_eff, prev, dout_pad).astype(weight_dtype),
             _pad2d(shift_eff, 1, dout_pad).astype(jnp.float32)))
        prev = dout_pad
    fused["latent_wt"] = _pad2d(params["latent_wt"], prev,
                                fused["latent_pad"]).astype(weight_dtype)
    return fused


# ---------------------------------------------------------------------------
# Pure-JAX reference (PyTorch eval-mode semantics, unfolded/unpadded f32 params)
# ---------------------------------------------------------------------------

def reference_forward(params, x, normalize_output=False):
    eps = params["bn_eps"]
    for layer in params["hidden"]:
        h = x @ layer["wt"] + layer["b"]
        scale = layer["gamma"] / jnp.sqrt(layer["running_var"] + eps)
        h = (h - layer["running_mean"]) * scale + layer["beta"]
        x = jnp.maximum(h, 0.0)
    z = x @ params["latent_wt"]
    if normalize_output:
        norm = jnp.sqrt(jnp.sum(z * z, axis=-1, keepdims=True))
        z = z / jnp.maximum(norm, 1e-12)
    return z


if __name__ == "__main__":
    key = jax.random.PRNGKey(0)
    kx, kp = jax.random.split(key)

    batch = 8
    in_channel = 32
    hidden_layers = [64, 64]
    latent_dim = 16
    normalize_output = True

    x = jax.random.normal(kx, (batch, in_channel), jnp.float32)
    params = init_params(kp, in_channel, hidden_layers, latent_dim)
    fused = fuse_params(params)                      # bf16 weights by default

    z = simple_encoder_forward(fused, x, normalize_output)
    z = jax.block_until_ready(z)

    z_ref = reference_forward(params, x, normalize_output)
    assert z.shape == (batch, latent_dim), z.shape
    # bf16 matmul inputs -> looser tolerance than the pure-f32 version
    err = float(jnp.max(jnp.abs(z - z_ref)))
    assert jnp.allclose(z, z_ref, atol=3e-2, rtol=3e-2), f"mismatch vs reference, max|err|={err}"

    print("KERNEL_OK")
</pallas_src>

<mosaic_0001>
module attributes {stable_mosaic.version = 11 : i64} {
  func.func @kernel(%arg0: i32, %arg1: memref<8x32xf32, #tpu.memory_space<vmem>>, %arg2: memref<32x128xbf16, #tpu.memory_space<vmem>>, %arg3: memref<1x128xf32, #tpu.memory_space<vmem>>, %arg4: memref<128x128xbf16, #tpu.memory_space<vmem>>, %arg5: memref<1x128xf32, #tpu.memory_space<vmem>>, %arg6: memref<128x128xbf16, #tpu.memory_space<vmem>>, %arg7: memref<8x128xf32, #tpu.memory_space<vmem>>) attributes {dimension_semantics = [#tpu.dimension_semantics<parallel>], iteration_bounds = array<i64: 1>, scalar_prefetch = 0 : i64, scratch_operands = 0 : i64, tpu.core_type = #tpu.core_type<tc>, window_params = [{transform_indices = @transform_0, window_bounds = array<i64: 8, 32>}, {pipeline_mode = #tpu.pipeline_mode<synchronous>, transform_indices = @transform_1, window_bounds = array<i64: 32, 128>}, {pipeline_mode = #tpu.pipeline_mode<synchronous>, transform_indices = @transform_2, window_bounds = array<i64: 1, 128>}, {pipeline_mode = #tpu.pipeline_mode<synchronous>, transform_indices = @transform_3, window_bounds = array<i64: 128, 128>}, {pipeline_mode = #tpu.pipeline_mode<synchronous>, transform_indices = @transform_4, window_bounds = array<i64: 1, 128>}, {pipeline_mode = #tpu.pipeline_mode<synchronous>, transform_indices = @transform_5, window_bounds = array<i64: 128, 128>}, {transform_indices = @transform_6, window_bounds = array<i64: 8, 128>}]} {
    %c0 = arith.constant 0 : index
    %c0_0 = arith.constant 0 : index
    %0 = vector.load %arg1[%c0, %c0_0] : memref<8x32xf32, #tpu.memory_space<vmem>>, vector<8x32xf32>
    %1 = arith.truncf %0 : vector<8x32xf32> to vector<8x32xbf16>
    %c0_1 = arith.constant 0 : index
    %c0_2 = arith.constant 0 : index
    %2 = vector.load %arg2[%c0_1, %c0_2] : memref<32x128xbf16, #tpu.memory_space<vmem>>, vector<32x128xbf16>
    %cst = arith.constant dense<0.000000e+00> : vector<8x128xf32>
    %3 = tpu.matmul %1, %2, %cst {dimension_numbers = #tpu.dot_dimension_numbers<[1], [0], [0], [1], [0, 0, 1, 1], [], []>} : vector<8x32xbf16>, vector<32x128xbf16>, vector<8x128xf32> -> vector<8x128xf32>
    %c0_3 = arith.constant 0 : index
    %c0_4 = arith.constant 0 : index
    %4 = vector.load %arg3[%c0_3, %c0_4] : memref<1x128xf32, #tpu.memory_space<vmem>>, vector<1x128xf32>
    %5 = vector.broadcast %4 : vector<1x128xf32> to vector<8x128xf32>
    %6 = arith.addf %3, %5 : vector<8x128xf32>
    %cst_5 = arith.constant 0.000000e+00 : f32
    %7 = vector.broadcast %cst_5 : f32 to vector<8x128xf32>
    %8 = arith.maximumf %6, %7 : vector<8x128xf32>
    %9 = arith.truncf %8 : vector<8x128xf32> to vector<8x128xbf16>
    %c0_6 = arith.constant 0 : index
    %c0_7 = arith.constant 0 : index
    %10 = vector.load %arg4[%c0_6, %c0_7] : memref<128x128xbf16, #tpu.memory_space<vmem>>, vector<128x128xbf16>
    %cst_8 = arith.constant dense<0.000000e+00> : vector<8x128xf32>
    %11 = tpu.matmul %9, %10, %cst_8 {dimension_numbers = #tpu.dot_dimension_numbers<[1], [0], [0], [1], [0, 0, 1, 1], [], []>} : vector<8x128xbf16>, vector<128x128xbf16>, vector<8x128xf32> -> vector<8x128xf32>
    %c0_9 = arith.constant 0 : index
    %c0_10 = arith.constant 0 : index
    %12 = vector.load %arg5[%c0_9, %c0_10] : memref<1x128xf32, #tpu.memory_space<vmem>>, vector<1x128xf32>
    %13 = vector.broadcast %12 : vector<1x128xf32> to vector<8x128xf32>
    %14 = arith.addf %11, %13 : vector<8x128xf32>
    %cst_11 = arith.constant 0.000000e+00 : f32
    %15 = vector.broadcast %cst_11 : f32 to vector<8x128xf32>
    %16 = arith.maximumf %14, %15 : vector<8x128xf32>
    %17 = arith.truncf %16 : vector<8x128xf32> to vector<8x128xbf16>
    %c0_12 = arith.constant 0 : index
    %c0_13 = arith.constant 0 : index
    %18 = vector.load %arg6[%c0_12, %c0_13] : memref<128x128xbf16, #tpu.memory_space<vmem>>, vector<128x128xbf16>
    %cst_14 = arith.constant dense<0.000000e+00> : vector<8x128xf32>
    %19 = tpu.matmul %17, %18, %cst_14 {dimension_numbers = #tpu.dot_dimension_numbers<[1], [0], [0], [1], [0, 0, 1, 1], [], []>} : vector<8x128xbf16>, vector<128x128xbf16>, vector<8x128xf32> -> vector<8x128xf32>
    %20 = arith.mulf %19, %19 : vector<8x128xf32>
    %cst_15 = arith.constant dense<0.000000e+00> : vector<8xf32>
    %21 = vector.multi_reduction <add>, %20, %cst_15 [1] : vector<8x128xf32> to vector<8xf32>
    %22 = vector.shape_cast %21 : vector<8xf32> to vector<8x1xf32>
    %cst_16 = arith.constant 1.000000e-24 : f32
    %23 = vector.broadcast %cst_16 : f32 to vector<8x1xf32>
    %24 = arith.maximumf %22, %23 : vector<8x1xf32>
    %25 = math.rsqrt %24 : vector<8x1xf32>
    %26 = vector.broadcast %25 : vector<8x1xf32> to vector<8x128xf32>
    %27 = arith.mulf %19, %26 : vector<8x128xf32>
    %c0_17 = arith.constant 0 : index
    %c0_18 = arith.constant 0 : index
    %28 = vector.load %arg7[%c0_17, %c0_18] : memref<8x128xf32, #tpu.memory_space<vmem>>, vector<8x128xf32>
    tpu.vector_store %arg7[%c0_17, %c0_18], %27 {strides = array<i32>} : memref<8x128xf32, #tpu.memory_space<vmem>>, vector<8x128xf32>,
    return
  }
  func.func @transform_0(%arg0: i32) -> (i32, i32) {
    %c0_i32 = arith.constant 0 : i32
    %c0_i32_0 = arith.constant 0 : i32
    return %arg0, %c0_i32 : i32, i32
  }
  func.func @transform_1(%arg0: i32) -> (i32, i32) {
    %c0_i32 = arith.constant 0 : i32
    %c0_i32_0 = arith.constant 0 : i32
    %c0_i32_1 = arith.constant 0 : i32
    return %c0_i32, %c0_i32_0 : i32, i32
  }
  func.func @transform_2(%arg0: i32) -> (i32, i32) {
    %c0_i32 = arith.constant 0 : i32
    %c0_i32_0 = arith.constant 0 : i32
    %c0_i32_1 = arith.constant 0 : i32
    return %c0_i32, %c0_i32_0 : i32, i32
  }
  func.func @transform_3(%arg0: i32) -> (i32, i32) {
    %c0_i32 = arith.constant 0 : i32
    %c0_i32_0 = arith.constant 0 : i32
    %c0_i32_1 = arith.constant 0 : i32
    return %c0_i32, %c0_i32_0 : i32, i32
  }
  func.func @transform_4(%arg0: i32) -> (i32, i32) {
    %c0_i32 = arith.constant 0 : i32
    %c0_i32_0 = arith.constant 0 : i32
    %c0_i32_1 = arith.constant 0 : i32
    return %c0_i32, %c0_i32_0 : i32, i32
  }
  func.func @transform_5(%arg0: i32) -> (i32, i32) {
    %c0_i32 = arith.constant 0 : i32
    %c0_i32_0 = arith.constant 0 : i32
    %c0_i32_1 = arith.constant 0 : i32
    return %c0_i32, %c0_i32_0 : i32, i32
  }
  func.func @transform_6(%arg0: i32) -> (i32, i32) {
    %c0_i32 = arith.constant 0 : i32
    %c0_i32_0 = arith.constant 0 : i32
    return %arg0, %c0_i32 : i32, i32
  }
}

module attributes {stable_mosaic.version = 11 : i64} {
  func.func @kernel(%arg0: i32, %arg1: memref<8x32xf32, #tpu.memory_space<vmem>>, %arg2: memref<32x128xbf16, #tpu.memory_space<vmem>>, %arg3: memref<1x128xf32, #tpu.memory_space<vmem>>, %arg4: memref<128x128xbf16, #tpu.memory_space<vmem>>, %arg5: memref<1x128xf32, #tpu.memory_space<vmem>>, %arg6: memref<128x128xbf16, #tpu.memory_space<vmem>>, %arg7: memref<8x128xf32, #tpu.memory_space<vmem>>) attributes {dimension_semantics = [#tpu.dimension_semantics<parallel>], iteration_bounds = array<i64: 1>, scalar_prefetch = 0 : i64, scratch_operands = 0 : i64, tpu.core_type = #tpu.core_type<tc>, window_params = [{transform_indices = @transform_0, window_bounds = array<i64: 8, 32>}, {pipeline_mode = #tpu.pipeline_mode<synchronous>, transform_indices = @transform_1, window_bounds = array<i64: 32, 128>}, {pipeline_mode = #tpu.pipeline_mode<synchronous>, transform_indices = @transform_2, window_bounds = array<i64: 1, 128>}, {pipeline_mode = #tpu.pipeline_mode<synchronous>, transform_indices = @transform_3, window_bounds = array<i64: 128, 128>}, {pipeline_mode = #tpu.pipeline_mode<synchronous>, transform_indices = @transform_4, window_bounds = array<i64: 1, 128>}, {pipeline_mode = #tpu.pipeline_mode<synchronous>, transform_indices = @transform_5, window_bounds = array<i64: 128, 128>}, {transform_indices = @transform_6, window_bounds = array<i64: 8, 128>}]} {
    %c0 = arith.constant 0 : index
    %c0_0 = arith.constant 0 : index
    %0 = vector.load %arg1[%c0, %c0_0] : memref<8x32xf32, #tpu.memory_space<vmem>>, vector<8x32xf32>
    %1 = arith.truncf %0 : vector<8x32xf32> to vector<8x32xbf16>
    %c0_1 = arith.constant 0 : index
    %c0_2 = arith.constant 0 : index
    %2 = vector.load %arg2[%c0_1, %c0_2] : memref<32x128xbf16, #tpu.memory_space<vmem>>, vector<32x128xbf16>
    %cst = arith.constant dense<0.000000e+00> : vector<8x128xf32>
    %3 = tpu.matmul %1, %2, %cst {dimension_numbers = #tpu.dot_dimension_numbers<[1], [0], [0], [1], [0, 0, 1, 1], [], []>} : vector<8x32xbf16>, vector<32x128xbf16>, vector<8x128xf32> -> vector<8x128xf32>
    %c0_3 = arith.constant 0 : index
    %c0_4 = arith.constant 0 : index
    %4 = vector.load %arg3[%c0_3, %c0_4] : memref<1x128xf32, #tpu.memory_space<vmem>>, vector<1x128xf32>
    %5 = vector.broadcast %4 : vector<1x128xf32> to vector<8x128xf32>
    %6 = arith.addf %3, %5 : vector<8x128xf32>
    %cst_5 = arith.constant 0.000000e+00 : f32
    %7 = vector.broadcast %cst_5 : f32 to vector<8x128xf32>
    %8 = arith.maximumf %6, %7 : vector<8x128xf32>
    %9 = arith.truncf %8 : vector<8x128xf32> to vector<8x128xbf16>
    %c0_6 = arith.constant 0 : index
    %c0_7 = arith.constant 0 : index
    %10 = vector.load %arg4[%c0_6, %c0_7] : memref<128x128xbf16, #tpu.memory_space<vmem>>, vector<128x128xbf16>
    %cst_8 = arith.constant dense<0.000000e+00> : vector<8x128xf32>
    %11 = tpu.matmul %9, %10, %cst_8 {dimension_numbers = #tpu.dot_dimension_numbers<[1], [0], [0], [1], [0, 0, 1, 1], [], []>} : vector<8x128xbf16>, vector<128x128xbf16>, vector<8x128xf32> -> vector<8x128xf32>
    %c0_9 = arith.constant 0 : index
    %c0_10 = arith.constant 0 : index
    %12 = vector.load %arg5[%c0_9, %c0_10] : memref<1x128xf32, #tpu.memory_space<vmem>>, vector<1x128xf32>
    %13 = vector.broadcast %12 : vector<1x128xf32> to vector<8x128xf32>
    %14 = arith.addf %11, %13 : vector<8x128xf32>
    %cst_11 = arith.constant 0.000000e+00 : f32
    %15 = vector.broadcast %cst_11 : f32 to vector<8x128xf32>
    %16 = arith.maximumf %14, %15 : vector<8x128xf32>
    %17 = arith.truncf %16 : vector<8x128xf32> to vector<8x128xbf16>
    %c0_12 = arith.constant 0 : index
    %c0_13 = arith.constant 0 : index
    %18 = vector.load %arg6[%c0_12, %c0_13] : memref<128x128xbf16, #tpu.memory_space<vmem>>, vector<128x128xbf16>
    %cst_14 = arith.constant dense<0.000000e+00> : vector<8x128xf32>
    %19 = tpu.matmul %17, %18, %cst_14 {dimension_numbers = #tpu.dot_dimension_numbers<[1], [0], [0], [1], [0, 0, 1, 1], [], []>} : vector<8x128xbf16>, vector<128x128xbf16>, vector<8x128xf32> -> vector<8x128xf32>
    %20 = arith.mulf %19, %19 : vector<8x128xf32>
    %cst_15 = arith.constant dense<0.000000e+00> : vector<8xf32>
    %21 = vector.multi_reduction <add>, %20, %cst_15 [1] : vector<8x128xf32> to vector<8xf32>
    %22 = vector.shape_cast %21 : vector<8xf32> to vector<8x1xf32>
    %cst_16 = arith.constant 1.000000e-24 : f32
    %23 = vector.broadcast %cst_16 : f32 to vector<8x1xf32>
    %24 = arith.maximumf %22, %23 : vector<8x1xf32>
    %25 = math.rsqrt %24 : vector<8x1xf32>
    %26 = vector.broadcast %25 : vector<8x1xf32> to vector<8x128xf32>
    %27 = arith.mulf %19, %26 : vector<8x128xf32>
    %c0_17 = arith.constant 0 : index
    %c0_18 = arith.constant 0 : index
    %28 = vector.load %arg7[%c0_17, %c0_18] : memref<8x128xf32, #tpu.memory_space<vmem>>, vector<8x128xf32>
    tpu.vector_store %arg7[%c0_17, %c0_18], %27 {strides = array<i32>} : memref<8x128xf32, #tpu.memory_space<vmem>>, vector<8x128xf32>,
    return
  }
  func.func @transform_0(%arg0: i32) -> (i32, i32) {
    %c0_i32 = arith.constant 0 : i32
    %c0_i32_0 = arith.constant 0 : i32
    return %arg0, %c0_i32 : i32, i32
  }
  func.func @transform_1(%arg0: i32) -> (i32, i32) {
    %c0_i32 = arith.constant 0 : i32
    %c0_i32_0 = arith.constant 0 : i32
    %c0_i32_1 = arith.constant 0 : i32
    return %c0_i32, %c0_i32_0 : i32, i32
  }
  func.func @transform_2(%arg0: i32) -> (i32, i32) {
    %c0_i32 = arith.constant 0 : i32
    %c0_i32_0 = arith.constant 0 : i32
    %c0_i32_1 = arith.constant 0 : i32
    return %c0_i32, %c0_i32_0 : i32, i32
  }
  func.func @transform_3(%arg0: i32) -> (i32, i32) {
    %c0_i32 = arith.constant 0 : i32
    %c0_i32_0 = arith.constant 0 : i32
    %c0_i32_1 = arith.constant 0 : i32
    return %c0_i32, %c0_i32_0 : i32, i32
  }
  func.func @transform_4(%arg0: i32) -> (i32, i32) {
    %c0_i32 = arith.constant 0 : i32
    %c0_i32_0 = arith.constant 0 : i32
    %c0_i32_1 = arith.constant 0 : i32
    return %c0_i32, %c0_i32_0 : i32, i32
  }
  func.func @transform_5(%arg0: i32) -> (i32, i32) {
    %c0_i32 = arith.constant 0 : i32
    %c0_i32_0 = arith.constant 0 : i32
    %c0_i32_1 = arith.constant 0 : i32
    return %c0_i32, %c0_i32_0 : i32, i32
  }
  func.func @transform_6(%arg0: i32) -> (i32, i32) {
    %c0_i32 = arith.constant 0 : i32
    %c0_i32_0 = arith.constant 0 : i32
    return %arg0, %c0_i32 : i32, i32
  }
}

</mosaic_0001>

<llo_original>
// kernel: tpu_custom_call.1
$region0: #{tpu_custom_call.1}
  #allocation0 [shape = 'u32[]', space=smem, size = 0x4, offset = 0x4, fixed_abs, tag = 'smem constant byte address 0x4 - core index']
  #allocation1 [shape = 'u32[144,128]{1,0:T(1,128)}', space=vmem, size = 0x12000, scoped, tag = 'internal scratch']
  %s0 = inlined_call_operand.hbm [shape: f32[8,32], index: 0, kind: input, shape index: {}]
  %s1 = inlined_call_operand.hbm [shape: bf16[32,128], index: 1, kind: input, shape index: {}]
  %s2 = inlined_call_operand.vmem [shape: f32[1,128], index: 2, kind: input, shape index: {}]
  %s3 = inlined_call_operand.hbm [shape: bf16[128,128], index: 3, kind: input, shape index: {}]
  %s4 = inlined_call_operand.vmem [shape: f32[1,128], index: 4, kind: input, shape index: {}]
  %s5 = inlined_call_operand.hbm [shape: bf16[128,128], index: 5, kind: input, shape index: {}]
  %s6 = inlined_call_operand.hbm [shape: f32[8,128], index: 6, kind: output, shape index: {}]
  %s7 = sld [smem:[#allocation0]]
  $region50: #{tpu_custom_call.1} parent=0
    _
  %s9 = ssub.s32 1, %s7
  %s10 = scalar_select 0, %s9, %s7
  $region1: #{tpu_custom_call.1} parent=0
    #allocation2 [shape = 'u8[4096]{0}', space=vmem, size = 0x1000, scoped, tag = 'input window, operand 0, single buffered']
    #allocation3 [shape = 's32[1]{0}', space=sflag, size = 0x4, scoped, tag = 'scoped memory for tpu_custom_call.1']
    #allocation4 [shape = 's32[1]{0}', space=sflag, size = 0x4, scoped, tag = 'scoped memory for tpu_custom_call.1']
    #allocation5 [shape = 'u8[8192]{0}', space=vmem, size = 0x2000, scoped, tag = 'input window, operand 1, single buffered']
    #allocation6 [shape = 's32[1]{0}', space=sflag, size = 0x4, scoped, tag = 'scoped memory for tpu_custom_call.1']
    #allocation7 [shape = 'u8[32768]{0}', space=vmem, size = 0x8000, scoped, tag = 'input window, operand 3, single buffered']
    #allocation8 [shape = 'u8[32768]{0}', space=vmem, size = 0x8000, scoped, tag = 'input window, operand 5, single buffered']
    #allocation9 [shape = 's32[1]{0}', space=sflag, size = 0x4, scoped, tag = 'scoped memory for tpu_custom_call.1']
    #allocation10 [shape = 'u8[4096]{0}', space=vmem, size = 0x1000, scoped, tag = 'output window, operand 0, single buffered']
    %11 = vsyncpa [#allocation3], 0
    %12 = vsyncpa [#allocation6], 0
    %13 = vsyncpa [#allocation9], 0
    %14 = vsyncpa [#allocation4], 0
    // Predicated region
    $region2: #{tpu_custom_call.1} parent=1 // pred_check
      _
    $region3: #{tpu_custom_call.1} parent=1 // pred_check_branch
      %16 = sbr.rel (0) target = $region5
    $region4: #{tpu_custom_call.1} parent=1 // pred_region
      %s18 = ssub.s32 128, 128
      %19 = vsyncadd [#allocation3], %s18
      %s21 = sshll.u32 [#allocation2], 4
      %s22 = int_to_ptr.vmem [resolvable:$true] %s21
      %24 = dma.hbm_to_vmem [thread:$0]  %s0, 128, %s22, [#allocation3]
    $region5: #{tpu_custom_call.1} parent=1 // pred_fallthru
      _
    // Predicated region
    $region6: #{tpu_custom_call.1} parent=1 // pred_check
      _
    $region7: #{tpu_custom_call.1} parent=1 // pred_check_branch
      %26 = sbr.rel (0) target = $region9
    $region8: #{tpu_custom_call.1} parent=1 // pred_region
      %s28 = ssub.s32 256, 256
      %29 = vsyncadd [#allocation6], %s28
      %s30 = sshll.u32 [#allocation5], 4
      %s31 = int_to_ptr.vmem [resolvable:$true] %s30
      %36 = dma.hbm_to_vmem [thread:$0]  %s1, 256, %s31, [#allocation6], 64, 64, 4
    $region9: #{tpu_custom_call.1} parent=1 // pred_fallthru
      _
    // Predicated region
    $region10: #{tpu_custom_call.1} parent=1 // pred_check
      _
    $region11: #{tpu_custom_call.1} parent=1 // pred_check_branch
      %38 = sbr.rel (0) target = $region13
    $region12: #{tpu_custom_call.1} parent=1 // pred_region
      _
    $region13: #{tpu_custom_call.1} parent=1 // pred_fallthru
      _
    // Predicated region
    $region14: #{tpu_custom_call.1} parent=1 // pred_check
      _
    $region15: #{tpu_custom_call.1} parent=1 // pred_check_branch
      %40 = sbr.rel (0) target = $region17
    $region16: #{tpu_custom_call.1} parent=1 // pred_region
      %s42 = ssub.s32 1024, 1024
      %43 = vsyncadd [#allocation6], %s42
      %s44 = sshll.u32 [#allocation7], 4
      %s45 = int_to_ptr.vmem [resolvable:$true] %s44
      %50 = dma.hbm_to_vmem [thread:$0]  %s3, 1024, %s45, [#allocation6], 64, 64, 4
    $region17: #{tpu_custom_call.1} parent=1 // pred_fallthru
      _
    // Predicated region
    $region18: #{tpu_custom_call.1} parent=1 // pred_check
      _
    $region19: #{tpu_custom_call.1} parent=1 // pred_check_branch
      %52 = sbr.rel (0) target = $region21
    $region20: #{tpu_custom_call.1} parent=1 // pred_region
      _
    $region21: #{tpu_custom_call.1} parent=1 // pred_fallthru
      _
    // Predicated region
    $region22: #{tpu_custom_call.1} parent=1 // pred_check
      _
    $region23: #{tpu_custom_call.1} parent=1 // pred_check_branch
      %54 = sbr.rel (0) target = $region25
    $region24: #{tpu_custom_call.1} parent=1 // pred_region
      %s56 = ssub.s32 1024, 1024
      %57 = vsyncadd [#allocation9], %s56
      %s58 = sshll.u32 [#allocation8], 4
      %s59 = int_to_ptr.vmem [resolvable:$true] %s58
      %64 = dma.hbm_to_vmem [thread:$0]  %s5, 1024, %s59, [#allocation9], 64, 64, 4
    $region25: #{tpu_custom_call.1} parent=1 // pred_fallthru
      _
    // Predicated region
    $region26: #{tpu_custom_call.1} parent=1 // pred_check
      _
    $region27: #{tpu_custom_call.1} parent=1 // pred_check_branch
      %66 = sbr.rel (0) target = $region29
    $region28: #{tpu_custom_call.1} parent=1 // pred_region
      %67 = dma.done [#allocation3], 128
    $region29: #{tpu_custom_call.1} parent=1 // pred_fallthru
      _
    // Predicated region
    $region30: #{tpu_custom_call.1} parent=1 // pred_check
      _
    $region31: #{tpu_custom_call.1} parent=1 // pred_check_branch
      %69 = sbr.rel (0) target = $region33
    $region32: #{tpu_custom_call.1} parent=1 // pred_region
      %70 = dma.done [#allocation6], 256
    $region33: #{tpu_custom_call.1} parent=1 // pred_fallthru
      _
    // Predicated region
    $region34: #{tpu_custom_call.1} parent=1 // pred_check
      _
    $region35: #{tpu_custom_call.1} parent=1 // pred_check_branch
      %72 = sbr.rel (0) target = $region37
    $region36: #{tpu_custom_call.1} parent=1 // pred_region
      %73 = dma.done [#allocation6], 1024
    $region37: #{tpu_custom_call.1} parent=1 // pred_fallthru
      _
    // Predicated region
    $region38: #{tpu_custom_call.1} parent=1 // pred_check
      _
    $region39: #{tpu_custom_call.1} parent=1 // pred_check_branch
      %75 = sbr.rel (0) target = $region41
    $region40: #{tpu_custom_call.1} parent=1 // pred_region
      %76 = dma.done [#allocation9], 1024
    $region41: #{tpu_custom_call.1} parent=1 // pred_fallthru
      _
    %v78 = vld [vmem:[#allocation2] sm:$0xff]
    %v79 = vpack.c.bf16 %v78, %v78
    %v80 = vld [vmem:[#allocation5] sm:$0xf]
    %v81 = vld [vmem:[#allocation5 + $0x4] sm:$0xf]
    %v82 = vld [vmem:[#allocation5 + $0x8] sm:$0xf]
    %v83 = vld [vmem:[#allocation5 + $0xc] sm:$0xf]
    %v84 = vld [vmem:[%s2] sm:$0x1]
    %v86 = vlaneseq
    %v87 = vshrl.u32 %v86, 7
    %v88 = vsub.s32 0, %v87
    %v89 = vrot.slane %v84, %v88
    %v95 = vunpack.c.l.b16 %v80
    %v96 = vunpack.c.l.b16 %v81
    %v97 = vunpack.c.l.b16 %v82
    %v98 = vunpack.c.l.b16 %v83
    %v99 = vpack.c.b16 %v96, %v95
    %v100 = vpack.c.b16 %v98, %v97
    %vm103 = vcmask 261120
    %v105 = vsel %vm103, %v79, 0
    %107 = vmatprep.subr.bf16.mxu0 0
    %108 = vmatpush1.bf16.msra.mxu0 %v99
    %109 = vmatprep.subr.bf16.mxu0 0
    %110 = vmatpush1.bf16.msra.mxu0 %v100
    %111 = vmatprep.subr.bf16.mxu0 0
    %112 = vmatpush1.bf16.msra.mxu0 0
    %113 = vmatprep.subr.bf16.mxu0 0
    %114 = vmatpush1.bf16.msra.mxu0 0
    %115 = vmatprep.subr.bf16.mxu0 0
    %116 = vmatpush1.bf16.msra.mxu0 0
    %117 = vmatprep.subr.bf16.mxu0 0
    %118 = vmatpush1.bf16.msra.mxu0 0
    %119 = vmatprep.subr.bf16.mxu0 0
    %120 = vmatpush1.bf16.msra.mxu0 0
    %121 = vmatprep.subr.bf16.mxu0 0
    %122 = vmatpush1.bf16.msra.mxu0 0
    %123 = vmatprep.subr.bf16.mxu0 0
    %124 = vmatpush1.bf16.msra.mxu0 0
    %125 = vmatprep.subr.bf16.mxu0 0
    %126 = vmatpush1.bf16.msra.mxu0 0
    %127 = vmatprep.subr.bf16.mxu0 0
    %128 = vmatpush1.bf16.msra.mxu0 0
    %129 = vmatprep.subr.bf16.mxu0 0
    %130 = vmatpush1.bf16.msra.mxu0 0
    %131 = vmatprep.subr.bf16.mxu0 0
    %132 = vmatpush1.bf16.msra.mxu0 0
    %133 = vmatprep.subr.bf16.mxu0 0
    %134 = vmatpush1.bf16.msra.mxu0 0
    %135 = vmatprep.subr.bf16.mxu0 0
    %136 = vmatpush1.bf16.msra.mxu0 0
    %137 = vmatprep.subr.bf16.mxu0 0
    %138 = vmatpush1.bf16.msra.mxu0 0
    %139 = vmatprep.mubr.bf16.mxu0 0
    %140 = vmatmul.mubr.bf16.gmra.mrb[0].mxu0 %v105
    %v141 = vpop.f32.mrb[0].mxu0
    %v142 = vadd.f32 %v89, %v141
    %v143 = vpop.f32.mrb[0].mxu0
    %v144 = vpop.f32.mrb[0].mxu0
    %v145 = vpop.f32.mrb[0].mxu0
    %146 = vdwg.mxu0
    %v147 = vmax.f32 %v142, 0.0
    %v148 = vpack.c.bf16 %v147, %v147
    %v149 = vld [vmem:[#allocation7] sm:$0xf]
    %v150 = vld [vmem:[#allocation7 + $0x4] sm:$0xf]
    %v151 = vld [vmem:[#allocation7 + $0x8] sm:$0xf]
    %v152 = vld [vmem:[#allocation7 + $0xc] sm:$0xf]
    %v153 = vld [vmem:[#allocation7 + $0x10] sm:$0xf]
    %v154 = vld [vmem:[#allocation7 + $0x14] sm:$0xf]
    %v155 = vld [vmem:[#allocation7 + $0x18] sm:$0xf]
    %v156 = vld [vmem:[#allocation7 + $0x1c] sm:$0xf]
    %v157 = vld [vmem:[#allocation7 + $0x20] sm:$0xf]
    %v158 = vld [vmem:[#allocation7 + $0x24] sm:$0xf]
    %v159 = vld [vmem:[#allocation7 + $0x28] sm:$0xf]
    %v160 = vld [vmem:[#allocation7 + $0x2c] sm:$0xf]
    %v161 = vld [vmem:[#allocation7 + $0x30] sm:$0xf]
    %v162 = vld [vmem:[#allocation7 + $0x34] sm:$0xf]
    %v163 = vld [vmem:[#allocation7 + $0x38] sm:$0xf]
    %v164 = vld [vmem:[#allocation7 + $0x3c] sm:$0xf]
    %v165 = vld [vmem:[%s4] sm:$0x1]
    %v167 = vlaneseq
    %v168 = vshrl.u32 %v167, 7
    %v169 = vsub.s32 0, %v168
    %v170 = vrot.slane %v165, %v169
    %v188 = vunpack.c.l.b16 %v149
    %v189 = vunpack.c.l.b16 %v150
    %v190 = vunpack.c.l.b16 %v151
    %v191 = vunpack.c.l.b16 %v152
    %v192 = vunpack.c.l.b16 %v153
    %v193 = vunpack.c.l.b16 %v154
    %v194 = vunpack.c.l.b16 %v155
    %v195 = vunpack.c.l.b16 %v156
    %v196 = vunpack.c.l.b16 %v157
    %v197 = vunpack.c.l.b16 %v158
    %v198 = vunpack.c.l.b16 %v159
    %v199 = vunpack.c.l.b16 %v160
    %v200 = vunpack.c.l.b16 %v161
    %v201 = vunpack.c.l.b16 %v162
    %v202 = vunpack.c.l.b16 %v163
    %v203 = vunpack.c.l.b16 %v164
    %v204 = vpack.c.b16 %v189, %v188
    %v205 = vpack.c.b16 %v191, %v190
    %v206 = vpack.c.b16 %v193, %v192
    %v207 = vpack.c.b16 %v195, %v194
    %v208 = vpack.c.b16 %v197, %v196
    %v209 = vpack.c.b16 %v199, %v198
    %v210 = vpack.c.b16 %v201, %v200
    %v211 = vpack.c.b16 %v203, %v202
    %220 = vmatprep.subr.bf16.mxu0 0
    %221 = vmatpush1.bf16.msra.mxu0 %v204
    %222 = vmatprep.subr.bf16.mxu0 0
    %223 = vmatpush1.bf16.msra.mxu0 %v205
    %224 = vmatprep.subr.bf16.mxu0 0
    %225 = vmatpush1.bf16.msra.mxu0 %v206
    %226 = vmatprep.subr.bf16.mxu0 0
    %227 = vmatpush1.bf16.msra.mxu0 %v207
    %228 = vmatprep.subr.bf16.mxu0 0
    %229 = vmatpush1.bf16.msra.mxu0 %v208
    %230 = vmatprep.subr.bf16.mxu0 0
    %231 = vmatpush1.bf16.msra.mxu0 %v209
    %232 = vmatprep.subr.bf16.mxu0 0
    %233 = vmatpush1.bf16.msra.mxu0 %v210
    %234 = vmatprep.subr.bf16.mxu0 0
    %235 = vmatpush1.bf16.msra.mxu0 %v211
    %236 = vmatprep.subr.bf16.mxu0 0
    %237 = vmatpush1.bf16.msra.mxu0 0
    %238 = vmatprep.subr.bf16.mxu0 0
    %239 = vmatpush1.bf16.msra.mxu0 0
    %240 = vmatprep.subr.bf16.mxu0 0
    %241 = vmatpush1.bf16.msra.mxu0 0
    %242 = vmatprep.subr.bf16.mxu0 0
    %243 = vmatpush1.bf16.msra.mxu0 0
    %244 = vmatprep.subr.bf16.mxu0 0
    %245 = vmatpush1.bf16.msra.mxu0 0
    %246 = vmatprep.subr.bf16.mxu0 0
    %247 = vmatpush1.bf16.msra.mxu0 0
    %248 = vmatprep.subr.bf16.mxu0 0
    %249 = vmatpush1.bf16.msra.mxu0 0
    %250 = vmatprep.subr.bf16.mxu0 0
    %251 = vmatpush1.bf16.msra.mxu0 0
    %252 = vmatprep.mubr.bf16.mxu0 0
    %253 = vmatmul.mubr.bf16.gmra.mrb[0].mxu0 %v148
    %v254 = vpop.f32.mrb[0].mxu0
    %v255 = vadd.f32 %v170, %v254
    %v256 = vpop.f32.mrb[0].mxu0
    %v257 = vpop.f32.mrb[0].mxu0
    %v258 = vpop.f32.mrb[0].mxu0
    %259 = vdwg.mxu0
    %v260 = vmax.f32 %v255, 0.0
    %v261 = vpack.c.bf16 %v260, %v260
    %v262 = vld [vmem:[#allocation8] sm:$0xf]
    %v263 = vld [vmem:[#allocation8 + $0x4] sm:$0xf]
    %v264 = vld [vmem:[#allocation8 + $0x8] sm:$0xf]
    %v265 = vld [vmem:[#allocation8 + $0xc] sm:$0xf]
    %v266 = vld [vmem:[#allocation8 + $0x10] sm:$0xf]
    %v267 = vld [vmem:[#allocation8 + $0x14] sm:$0xf]
    %v268 = vld [vmem:[#allocation8 + $0x18] sm:$0xf]
    %v269 = vld [vmem:[#allocation8 + $0x1c] sm:$0xf]
    %v270 = vld [vmem:[#allocation8 + $0x20] sm:$0xf]
    %v271 = vld [vmem:[#allocation8 + $0x24] sm:$0xf]
    %v272 = vld [vmem:[#allocation8 + $0x28] sm:$0xf]
    %v273 = vld [vmem:[#allocation8 + $0x2c] sm:$0xf]
    %v274 = vld [vmem:[#allocation8 + $0x30] sm:$0xf]
    %v275 = vld [vmem:[#allocation8 + $0x34] sm:$0xf]
    %v276 = vld [vmem:[#allocation8 + $0x38] sm:$0xf]
    %v277 = vld [vmem:[#allocation8 + $0x3c] sm:$0xf]
    %v294 = vunpack.c.l.b16 %v262
    %v295 = vunpack.c.l.b16 %v263
    %v296 = vunpack.c.l.b16 %v264
    %v297 = vunpack.c.l.b16 %v265
    %v298 = vunpack.c.l.b16 %v266
    %v299 = vunpack.c.l.b16 %v267
    %v300 = vunpack.c.l.b16 %v268
    %v301 = vunpack.c.l.b16 %v269
    %v302 = vunpack.c.l.b16 %v270
    %v303 = vunpack.c.l.b16 %v271
    %v304 = vunpack.c.l.b16 %v272
    %v305 = vunpack.c.l.b16 %v273
    %v306 = vunpack.c.l.b16 %v274
    %v307 = vunpack.c.l.b16 %v275
    %v308 = vunpack.c.l.b16 %v276
    %v309 = vunpack.c.l.b16 %v277
    %v310 = vpack.c.b16 %v295, %v294
    %v311 = vpack.c.b16 %v297, %v296
    %v312 = vpack.c.b16 %v299, %v298
    %v313 = vpack.c.b16 %v301, %v300
    %v314 = vpack.c.b16 %v303, %v302
    %v315 = vpack.c.b16 %v305, %v304
    %v316 = vpack.c.b16 %v307, %v306
    %v317 = vpack.c.b16 %v309, %v308
    %326 = vmatprep.subr.bf16.mxu0 0
    %327 = vmatpush1.bf16.msra.mxu0 %v310
    %328 = vmatprep.subr.bf16.mxu0 0
    %329 = vmatpush1.bf16.msra.mxu0 %v311
    %330 = vmatprep.subr.bf16.mxu0 0
    %331 = vmatpush1.bf16.msra.mxu0 %v312
    %332 = vmatprep.subr.bf16.mxu0 0
    %333 = vmatpush1.bf16.msra.mxu0 %v313
    %334 = vmatprep.subr.bf16.mxu0 0
    %335 = vmatpush1.bf16.msra.mxu0 %v314
    %336 = vmatprep.subr.bf16.mxu0 0
    %337 = vmatpush1.bf16.msra.mxu0 %v315
    %338 = vmatprep.subr.bf16.mxu0 0
    %339 = vmatpush1.bf16.msra.mxu0 %v316
    %340 = vmatprep.subr.bf16.mxu0 0
    %341 = vmatpush1.bf16.msra.mxu0 %v317
    %342 = vmatprep.subr.bf16.mxu0 0
    %343 = vmatpush1.bf16.msra.mxu0 0
    %344 = vmatprep.subr.bf16.mxu0 0
    %345 = vmatpush1.bf16.msra.mxu0 0
    %346 = vmatprep.subr.bf16.mxu0 0
    %347 = vmatpush1.bf16.msra.mxu0 0
    %348 = vmatprep.subr.bf16.mxu0 0
    %349 = vmatpush1.bf16.msra.mxu0 0
    %350 = vmatprep.subr.bf16.mxu0 0
    %351 = vmatpush1.bf16.msra.mxu0 0
    %352 = vmatprep.subr.bf16.mxu0 0
    %353 = vmatpush1.bf16.msra.mxu0 0
    %354 = vmatprep.subr.bf16.mxu0 0
    %355 = vmatpush1.bf16.msra.mxu0 0
    %356 = vmatprep.subr.bf16.mxu0 0
    %357 = vmatpush1.bf16.msra.mxu0 0
    %358 = vmatprep.mubr.bf16.mxu0 0
    %359 = vmatmul.mubr.bf16.gmra.mrb[0].mxu0 %v261
    %v360 = vpop.f32.mrb[0].mxu0
    %v361 = vadd.f32 0.0, %v360
    %v362 = vpop.f32.mrb[0].mxu0
    %v363 = vpop.f32.mrb[0].mxu0
    %v364 = vpop.f32.mrb[0].mxu0
    %365 = vdwg.mxu0
    %v366 = vmul.f32 %v361, %v361
    %367 = vadd.xlane.f32.xlu0 %v366
    %v368 = vpop.xlane.xlu0 %367
    %v369 = vmax.f32 %v368, 1e-24
    %v370 = vrsqrt.pop %v369
    %v371 = vmul.f32 %v361, %v370
    %372 = vst [vmem:[#allocation10] sm:$0xff] %v371
    // Predicated region
    $region42: #{tpu_custom_call.1} parent=1 // pred_check
      _
    $region43: #{tpu_custom_call.1} parent=1 // pred_check_branch
      %374 = sbr.rel (0) target = $region45
    $region44: #{tpu_custom_call.1} parent=1 // pred_region
      %s376 = ssub.s32 128, 128
      %377 = vsyncadd [#allocation4], %s376
      %s379 = sshll.u32 [#allocation10], 4
      %s380 = int_to_ptr.vmem [resolvable:$true] %s379
      %382 = dma.vmem_to_hbm [thread:$0]  %s380, 128, %s6, [#allocation4]
    $region45: #{tpu_custom_call.1} parent=1 // pred_fallthru
      _
    // Predicated region
    $region46: #{tpu_custom_call.1} parent=1 // pred_check
      _
    $region47: #{tpu_custom_call.1} parent=1 // pred_check_branch
      %384 = sbr.rel (0) target = $region49
    $region48: #{tpu_custom_call.1} parent=1 // pred_region
      %385 = dma.done [#allocation4], 128
    $region49: #{tpu_custom_call.1} parent=1 // pred_fallthru
      _
    %386 = vsyncpa [#allocation3], 1
    %387 = vsyncpa [#allocation6], 1
    %388 = vsyncpa [#allocation9], 1
    %389 = vsyncpa [#allocation4], 1

// kernel: tpu_custom_call.1
$region0: #{tpu_custom_call.1}
  #allocation0 [shape = 'u32[]', space=smem, size = 0x4, offset = 0x4, fixed_abs, tag = 'smem constant byte address 0x4 - core index']
  #allocation1 [shape = 'u32[144,128]{1,0:T(1,128)}', space=vmem, size = 0x12000, scoped, tag = 'internal scratch']
  %s0 = inlined_call_operand.hbm [shape: f32[8,32], index: 0, kind: input, shape index: {}]
  %s1 = inlined_call_operand.hbm [shape: bf16[32,128], index: 1, kind: input, shape index: {}]
  %s2 = inlined_call_operand.vmem [shape: f32[1,128], index: 2, kind: input, shape index: {}]
  %s3 = inlined_call_operand.hbm [shape: bf16[128,128], index: 3, kind: input, shape index: {}]
  %s4 = inlined_call_operand.vmem [shape: f32[1,128], index: 4, kind: input, shape index: {}]
  %s5 = inlined_call_operand.hbm [shape: bf16[128,128], index: 5, kind: input, shape index: {}]
  %s6 = inlined_call_operand.hbm [shape: f32[8,128], index: 6, kind: output, shape index: {}]
  %s7 = sld [smem:[#allocation0]]
  $region50: #{tpu_custom_call.1} parent=0
    _
  %s9 = ssub.s32 1, %s7
  %s10 = scalar_select 0, %s9, %s7
  $region1: #{tpu_custom_call.1} parent=0
    #allocation2 [shape = 'u8[4096]{0}', space=vmem, size = 0x1000, scoped, tag = 'input window, operand 0, single buffered']
    #allocation3 [shape = 's32[1]{0}', space=sflag, size = 0x4, scoped, tag = 'scoped memory for tpu_custom_call.1']
    #allocation4 [shape = 's32[1]{0}', space=sflag, size = 0x4, scoped, tag = 'scoped memory for tpu_custom_call.1']
    #allocation5 [shape = 'u8[8192]{0}', space=vmem, size = 0x2000, scoped, tag = 'input window, operand 1, single buffered']
    #allocation6 [shape = 's32[1]{0}', space=sflag, size = 0x4, scoped, tag = 'scoped memory for tpu_custom_call.1']
    #allocation7 [shape = 'u8[32768]{0}', space=vmem, size = 0x8000, scoped, tag = 'input window, operand 3, single buffered']
    #allocation8 [shape = 'u8[32768]{0}', space=vmem, size = 0x8000, scoped, tag = 'input window, operand 5, single buffered']
    #allocation9 [shape = 's32[1]{0}', space=sflag, size = 0x4, scoped, tag = 'scoped memory for tpu_custom_call.1']
    #allocation10 [shape = 'u8[4096]{0}', space=vmem, size = 0x1000, scoped, tag = 'output window, operand 0, single buffered']
    %11 = vsyncpa [#allocation3], 0
    %12 = vsyncpa [#allocation6], 0
    %13 = vsyncpa [#allocation9], 0
    %14 = vsyncpa [#allocation4], 0
    // Predicated region
    $region2: #{tpu_custom_call.1} parent=1 // pred_check
      _
    $region3: #{tpu_custom_call.1} parent=1 // pred_check_branch
      %16 = sbr.rel (0) target = $region5
    $region4: #{tpu_custom_call.1} parent=1 // pred_region
      %s18 = ssub.s32 128, 128
      %19 = vsyncadd [#allocation3], %s18
      %s21 = sshll.u32 [#allocation2], 4
      %s22 = int_to_ptr.vmem [resolvable:$true] %s21
      %24 = dma.hbm_to_vmem [thread:$0]  %s0, 128, %s22, [#allocation3]
    $region5: #{tpu_custom_call.1} parent=1 // pred_fallthru
      _
    // Predicated region
    $region6: #{tpu_custom_call.1} parent=1 // pred_check
      _
    $region7: #{tpu_custom_call.1} parent=1 // pred_check_branch
      %26 = sbr.rel (0) target = $region9
    $region8: #{tpu_custom_call.1} parent=1 // pred_region
      %s28 = ssub.s32 256, 256
      %29 = vsyncadd [#allocation6], %s28
      %s30 = sshll.u32 [#allocation5], 4
      %s31 = int_to_ptr.vmem [resolvable:$true] %s30
      %36 = dma.hbm_to_vmem [thread:$0]  %s1, 256, %s31, [#allocation6], 64, 64, 4
    $region9: #{tpu_custom_call.1} parent=1 // pred_fallthru
      _
    // Predicated region
    $region10: #{tpu_custom_call.1} parent=1 // pred_check
      _
    $region11: #{tpu_custom_call.1} parent=1 // pred_check_branch
      %38 = sbr.rel (0) target = $region13
    $region12: #{tpu_custom_call.1} parent=1 // pred_region
      _
    $region13: #{tpu_custom_call.1} parent=1 // pred_fallthru
      _
    // Predicated region
    $region14: #{tpu_custom_call.1} parent=1 // pred_check
      _
    $region15: #{tpu_custom_call.1} parent=1 // pred_check_branch
      %40 = sbr.rel (0) target = $region17
    $region16: #{tpu_custom_call.1} parent=1 // pred_region
      %s42 = ssub.s32 1024, 1024
      %43 = vsyncadd [#allocation6], %s42
      %s44 = sshll.u32 [#allocation7], 4
      %s45 = int_to_ptr.vmem [resolvable:$true] %s44
      %50 = dma.hbm_to_vmem [thread:$0]  %s3, 1024, %s45, [#allocation6], 64, 64, 4
    $region17: #{tpu_custom_call.1} parent=1 // pred_fallthru
      _
    // Predicated region
    $region18: #{tpu_custom_call.1} parent=1 // pred_check
      _
    $region19: #{tpu_custom_call.1} parent=1 // pred_check_branch
      %52 = sbr.rel (0) target = $region21
    $region20: #{tpu_custom_call.1} parent=1 // pred_region
      _
    $region21: #{tpu_custom_call.1} parent=1 // pred_fallthru
      _
    // Predicated region
    $region22: #{tpu_custom_call.1} parent=1 // pred_check
      _
    $region23: #{tpu_custom_call.1} parent=1 // pred_check_branch
      %54 = sbr.rel (0) target = $region25
    $region24: #{tpu_custom_call.1} parent=1 // pred_region
      %s56 = ssub.s32 1024, 1024
      %57 = vsyncadd [#allocation9], %s56
      %s58 = sshll.u32 [#allocation8], 4
      %s59 = int_to_ptr.vmem [resolvable:$true] %s58
      %64 = dma.hbm_to_vmem [thread:$0]  %s5, 1024, %s59, [#allocation9], 64, 64, 4
    $region25: #{tpu_custom_call.1} parent=1 // pred_fallthru
      _
    // Predicated region
    $region26: #{tpu_custom_call.1} parent=1 // pred_check
      _
    $region27: #{tpu_custom_call.1} parent=1 // pred_check_branch
      %66 = sbr.rel (0) target = $region29
    $region28: #{tpu_custom_call.1} parent=1 // pred_region
      %67 = dma.done [#allocation3], 128
    $region29: #{tpu_custom_call.1} parent=1 // pred_fallthru
      _
    // Predicated region
    $region30: #{tpu_custom_call.1} parent=1 // pred_check
      _
    $region31: #{tpu_custom_call.1} parent=1 // pred_check_branch
      %69 = sbr.rel (0) target = $region33
    $region32: #{tpu_custom_call.1} parent=1 // pred_region
      %70 = dma.done [#allocation6], 256
    $region33: #{tpu_custom_call.1} parent=1 // pred_fallthru
      _
    // Predicated region
    $region34: #{tpu_custom_call.1} parent=1 // pred_check
      _
    $region35: #{tpu_custom_call.1} parent=1 // pred_check_branch
      %72 = sbr.rel (0) target = $region37
    $region36: #{tpu_custom_call.1} parent=1 // pred_region
      %73 = dma.done [#allocation6], 1024
    $region37: #{tpu_custom_call.1} parent=1 // pred_fallthru
      _
    // Predicated region
    $region38: #{tpu_custom_call.1} parent=1 // pred_check
      _
    $region39: #{tpu_custom_call.1} parent=1 // pred_check_branch
      %75 = sbr.rel (0) target = $region41
    $region40: #{tpu_custom_call.1} parent=1 // pred_region
      %76 = dma.done [#allocation9], 1024
    $region41: #{tpu_custom_call.1} parent=1 // pred_fallthru
      _
    %v78 = vld [vmem:[#allocation2] sm:$0xff]
    %v79 = vpack.c.bf16 %v78, %v78
    %v80 = vld [vmem:[#allocation5] sm:$0xf]
    %v81 = vld [vmem:[#allocation5 + $0x4] sm:$0xf]
    %v82 = vld [vmem:[#allocation5 + $0x8] sm:$0xf]
    %v83 = vld [vmem:[#allocation5 + $0xc] sm:$0xf]
    %v84 = vld [vmem:[%s2] sm:$0x1]
    %v86 = vlaneseq
    %v87 = vshrl.u32 %v86, 7
    %v88 = vsub.s32 0, %v87
    %v89 = vrot.slane %v84, %v88
    %v95 = vunpack.c.l.b16 %v80
    %v96 = vunpack.c.l.b16 %v81
    %v97 = vunpack.c.l.b16 %v82
    %v98 = vunpack.c.l.b16 %v83
    %v99 = vpack.c.b16 %v96, %v95
    %v100 = vpack.c.b16 %v98, %v97
    %vm103 = vcmask 261120
    %v105 = vsel %vm103, %v79, 0
    %107 = vmatprep.subr.bf16.mxu0 0
    %108 = vmatpush1.bf16.msra.mxu0 %v99
    %109 = vmatprep.subr.bf16.mxu0 0
    %110 = vmatpush1.bf16.msra.mxu0 %v100
    %111 = vmatprep.subr.bf16.mxu0 0
    %112 = vmatpush1.bf16.msra.mxu0 0
    %113 = vmatprep.subr.bf16.mxu0 0
    %114 = vmatpush1.bf16.msra.mxu0 0
    %115 = vmatprep.subr.bf16.mxu0 0
    %116 = vmatpush1.bf16.msra.mxu0 0
    %117 = vmatprep.subr.bf16.mxu0 0
    %118 = vmatpush1.bf16.msra.mxu0 0
    %119 = vmatprep.subr.bf16.mxu0 0
    %120 = vmatpush1.bf16.msra.mxu0 0
    %121 = vmatprep.subr.bf16.mxu0 0
    %122 = vmatpush1.bf16.msra.mxu0 0
    %123 = vmatprep.subr.bf16.mxu0 0
    %124 = vmatpush1.bf16.msra.mxu0 0
    %125 = vmatprep.subr.bf16.mxu0 0
    %126 = vmatpush1.bf16.msra.mxu0 0
    %127 = vmatprep.subr.bf16.mxu0 0
    %128 = vmatpush1.bf16.msra.mxu0 0
    %129 = vmatprep.subr.bf16.mxu0 0
    %130 = vmatpush1.bf16.msra.mxu0 0
    %131 = vmatprep.subr.bf16.mxu0 0
    %132 = vmatpush1.bf16.msra.mxu0 0
    %133 = vmatprep.subr.bf16.mxu0 0
    %134 = vmatpush1.bf16.msra.mxu0 0
    %135 = vmatprep.subr.bf16.mxu0 0
    %136 = vmatpush1.bf16.msra.mxu0 0
    %137 = vmatprep.subr.bf16.mxu0 0
    %138 = vmatpush1.bf16.msra.mxu0 0
    %139 = vmatprep.mubr.bf16.mxu0 0
    %140 = vmatmul.mubr.bf16.gmra.mrb[0].mxu0 %v105
    %v141 = vpop.f32.mrb[0].mxu0
    %v142 = vadd.f32 %v89, %v141
    %v143 = vpop.f32.mrb[0].mxu0
    %v144 = vpop.f32.mrb[0].mxu0
    %v145 = vpop.f32.mrb[0].mxu0
    %146 = vdwg.mxu0
    %v147 = vmax.f32 %v142, 0.0
    %v148 = vpack.c.bf16 %v147, %v147
    %v149 = vld [vmem:[#allocation7] sm:$0xf]
    %v150 = vld [vmem:[#allocation7 + $0x4] sm:$0xf]
    %v151 = vld [vmem:[#allocation7 + $0x8] sm:$0xf]
    %v152 = vld [vmem:[#allocation7 + $0xc] sm:$0xf]
    %v153 = vld [vmem:[#allocation7 + $0x10] sm:$0xf]
    %v154 = vld [vmem:[#allocation7 + $0x14] sm:$0xf]
    %v155 = vld [vmem:[#allocation7 + $0x18] sm:$0xf]
    %v156 = vld [vmem:[#allocation7 + $0x1c] sm:$0xf]
    %v157 = vld [vmem:[#allocation7 + $0x20] sm:$0xf]
    %v158 = vld [vmem:[#allocation7 + $0x24] sm:$0xf]
    %v159 = vld [vmem:[#allocation7 + $0x28] sm:$0xf]
    %v160 = vld [vmem:[#allocation7 + $0x2c] sm:$0xf]
    %v161 = vld [vmem:[#allocation7 + $0x30] sm:$0xf]
    %v162 = vld [vmem:[#allocation7 + $0x34] sm:$0xf]
    %v163 = vld [vmem:[#allocation7 + $0x38] sm:$0xf]
    %v164 = vld [vmem:[#allocation7 + $0x3c] sm:$0xf]
    %v165 = vld [vmem:[%s4] sm:$0x1]
    %v167 = vlaneseq
    %v168 = vshrl.u32 %v167, 7
    %v169 = vsub.s32 0, %v168
    %v170 = vrot.slane %v165, %v169
    %v188 = vunpack.c.l.b16 %v149
    %v189 = vunpack.c.l.b16 %v150
    %v190 = vunpack.c.l.b16 %v151
    %v191 = vunpack.c.l.b16 %v152
    %v192 = vunpack.c.l.b16 %v153
    %v193 = vunpack.c.l.b16 %v154
    %v194 = vunpack.c.l.b16 %v155
    %v195 = vunpack.c.l.b16 %v156
    %v196 = vunpack.c.l.b16 %v157
    %v197 = vunpack.c.l.b16 %v158
    %v198 = vunpack.c.l.b16 %v159
    %v199 = vunpack.c.l.b16 %v160
    %v200 = vunpack.c.l.b16 %v161
    %v201 = vunpack.c.l.b16 %v162
    %v202 = vunpack.c.l.b16 %v163
    %v203 = vunpack.c.l.b16 %v164
    %v204 = vpack.c.b16 %v189, %v188
    %v205 = vpack.c.b16 %v191, %v190
    %v206 = vpack.c.b16 %v193, %v192
    %v207 = vpack.c.b16 %v195, %v194
    %v208 = vpack.c.b16 %v197, %v196
    %v209 = vpack.c.b16 %v199, %v198
    %v210 = vpack.c.b16 %v201, %v200
    %v211 = vpack.c.b16 %v203, %v202
    %220 = vmatprep.subr.bf16.mxu0 0
    %221 = vmatpush1.bf16.msra.mxu0 %v204
    %222 = vmatprep.subr.bf16.mxu0 0
    %223 = vmatpush1.bf16.msra.mxu0 %v205
    %224 = vmatprep.subr.bf16.mxu0 0
    %225 = vmatpush1.bf16.msra.mxu0 %v206
    %226 = vmatprep.subr.bf16.mxu0 0
    %227 = vmatpush1.bf16.msra.mxu0 %v207
    %228 = vmatprep.subr.bf16.mxu0 0
    %229 = vmatpush1.bf16.msra.mxu0 %v208
    %230 = vmatprep.subr.bf16.mxu0 0
    %231 = vmatpush1.bf16.msra.mxu0 %v209
    %232 = vmatprep.subr.bf16.mxu0 0
    %233 = vmatpush1.bf16.msra.mxu0 %v210
    %234 = vmatprep.subr.bf16.mxu0 0
    %235 = vmatpush1.bf16.msra.mxu0 %v211
    %236 = vmatprep.subr.bf16.mxu0 0
    %237 = vmatpush1.bf16.msra.mxu0 0
    %238 = vmatprep.subr.bf16.mxu0 0
    %239 = vmatpush1.bf16.msra.mxu0 0
    %240 = vmatprep.subr.bf16.mxu0 0
    %241 = vmatpush1.bf16.msra.mxu0 0
    %242 = vmatprep.subr.bf16.mxu0 0
    %243 = vmatpush1.bf16.msra.mxu0 0
    %244 = vmatprep.subr.bf16.mxu0 0
    %245 = vmatpush1.bf16.msra.mxu0 0
    %246 = vmatprep.subr.bf16.mxu0 0
    %247 = vmatpush1.bf16.msra.mxu0 0
    %248 = vmatprep.subr.bf16.mxu0 0
    %249 = vmatpush1.bf16.msra.mxu0 0
    %250 = vmatprep.subr.bf16.mxu0 0
    %251 = vmatpush1.bf16.msra.mxu0 0
    %252 = vmatprep.mubr.bf16.mxu0 0
    %253 = vmatmul.mubr.bf16.gmra.mrb[0].mxu0 %v148
    %v254 = vpop.f32.mrb[0].mxu0
    %v255 = vadd.f32 %v170, %v254
    %v256 = vpop.f32.mrb[0].mxu0
    %v257 = vpop.f32.mrb[0].mxu0
    %v258 = vpop.f32.mrb[0].mxu0
    %259 = vdwg.mxu0
    %v260 = vmax.f32 %v255, 0.0
    %v261 = vpack.c.bf16 %v260, %v260
    %v262 = vld [vmem:[#allocation8] sm:$0xf]
    %v263 = vld [vmem:[#allocation8 + $0x4] sm:$0xf]
    %v264 = vld [vmem:[#allocation8 + $0x8] sm:$0xf]
    %v265 = vld [vmem:[#allocation8 + $0xc] sm:$0xf]
    %v266 = vld [vmem:[#allocation8 + $0x10] sm:$0xf]
    %v267 = vld [vmem:[#allocation8 + $0x14] sm:$0xf]
    %v268 = vld [vmem:[#allocation8 + $0x18] sm:$0xf]
    %v269 = vld [vmem:[#allocation8 + $0x1c] sm:$0xf]
    %v270 = vld [vmem:[#allocation8 + $0x20] sm:$0xf]
    %v271 = vld [vmem:[#allocation8 + $0x24] sm:$0xf]
    %v272 = vld [vmem:[#allocation8 + $0x28] sm:$0xf]
    %v273 = vld [vmem:[#allocation8 + $0x2c] sm:$0xf]
    %v274 = vld [vmem:[#allocation8 + $0x30] sm:$0xf]
    %v275 = vld [vmem:[#allocation8 + $0x34] sm:$0xf]
    %v276 = vld [vmem:[#allocation8 + $0x38] sm:$0xf]
    %v277 = vld [vmem:[#allocation8 + $0x3c] sm:$0xf]
    %v294 = vunpack.c.l.b16 %v262
    %v295 = vunpack.c.l.b16 %v263
    %v296 = vunpack.c.l.b16 %v264
    %v297 = vunpack.c.l.b16 %v265
    %v298 = vunpack.c.l.b16 %v266
    %v299 = vunpack.c.l.b16 %v267
    %v300 = vunpack.c.l.b16 %v268
    %v301 = vunpack.c.l.b16 %v269
    %v302 = vunpack.c.l.b16 %v270
    %v303 = vunpack.c.l.b16 %v271
    %v304 = vunpack.c.l.b16 %v272
    %v305 = vunpack.c.l.b16 %v273
    %v306 = vunpack.c.l.b16 %v274
    %v307 = vunpack.c.l.b16 %v275
    %v308 = vunpack.c.l.b16 %v276
    %v309 = vunpack.c.l.b16 %v277
    %v310 = vpack.c.b16 %v295, %v294
    %v311 = vpack.c.b16 %v297, %v296
    %v312 = vpack.c.b16 %v299, %v298
    %v313 = vpack.c.b16 %v301, %v300
    %v314 = vpack.c.b16 %v303, %v302
    %v315 = vpack.c.b16 %v305, %v304
    %v316 = vpack.c.b16 %v307, %v306
    %v317 = vpack.c.b16 %v309, %v308
    %326 = vmatprep.subr.bf16.mxu0 0
    %327 = vmatpush1.bf16.msra.mxu0 %v310
    %328 = vmatprep.subr.bf16.mxu0 0
    %329 = vmatpush1.bf16.msra.mxu0 %v311
    %330 = vmatprep.subr.bf16.mxu0 0
    %331 = vmatpush1.bf16.msra.mxu0 %v312
    %332 = vmatprep.subr.bf16.mxu0 0
    %333 = vmatpush1.bf16.msra.mxu0 %v313
    %334 = vmatprep.subr.bf16.mxu0 0
    %335 = vmatpush1.bf16.msra.mxu0 %v314
    %336 = vmatprep.subr.bf16.mxu0 0
    %337 = vmatpush1.bf16.msra.mxu0 %v315
    %338 = vmatprep.subr.bf16.mxu0 0
    %339 = vmatpush1.bf16.msra.mxu0 %v316
    %340 = vmatprep.subr.bf16.mxu0 0
    %341 = vmatpush1.bf16.msra.mxu0 %v317
    %342 = vmatprep.subr.bf16.mxu0 0
    %343 = vmatpush1.bf16.msra.mxu0 0
    %344 = vmatprep.subr.bf16.mxu0 0
    %345 = vmatpush1.bf16.msra.mxu0 0
    %346 = vmatprep.subr.bf16.mxu0 0
    %347 = vmatpush1.bf16.msra.mxu0 0
    %348 = vmatprep.subr.bf16.mxu0 0
    %349 = vmatpush1.bf16.msra.mxu0 0
    %350 = vmatprep.subr.bf16.mxu0 0
    %351 = vmatpush1.bf16.msra.mxu0 0
    %352 = vmatprep.subr.bf16.mxu0 0
    %353 = vmatpush1.bf16.msra.mxu0 0
    %354 = vmatprep.subr.bf16.mxu0 0
    %355 = vmatpush1.bf16.msra.mxu0 0
    %356 = vmatprep.subr.bf16.mxu0 0
    %357 = vmatpush1.bf16.msra.mxu0 0
    %358 = vmatprep.mubr.bf16.mxu0 0
    %359 = vmatmul.mubr.bf16.gmra.mrb[0].mxu0 %v261
    %v360 = vpop.f32.mrb[0].mxu0
    %v361 = vadd.f32 0.0, %v360
    %v362 = vpop.f32.mrb[0].mxu0
    %v363 = vpop.f32.mrb[0].mxu0
    %v364 = vpop.f32.mrb[0].mxu0
    %365 = vdwg.mxu0
    %v366 = vmul.f32 %v361, %v361
    %367 = vadd.xlane.f32.xlu0 %v366
    %v368 = vpop.xlane.xlu0 %367
    %v369 = vmax.f32 %v368, 1e-24
    %v370 = vrsqrt.pop %v369
    %v371 = vmul.f32 %v361, %v370
    %372 = vst [vmem:[#allocation10] sm:$0xff] %v371
    // Predicated region
    $region42: #{tpu_custom_call.1} parent=1 // pred_check
      _
    $region43: #{tpu_custom_call.1} parent=1 // pred_check_branch
      %374 = sbr.rel (0) target = $region45
    $region44: #{tpu_custom_call.1} parent=1 // pred_region
      %s376 = ssub.s32 128, 128
      %377 = vsyncadd [#allocation4], %s376
      %s379 = sshll.u32 [#allocation10], 4
      %s380 = int_to_ptr.vmem [resolvable:$true] %s379
      %382 = dma.vmem_to_hbm [thread:$0]  %s380, 128, %s6, [#allocation4]
    $region45: #{tpu_custom_call.1} parent=1 // pred_fallthru
      _
    // Predicated region
    $region46: #{tpu_custom_call.1} parent=1 // pred_check
      _
    $region47: #{tpu_custom_call.1} parent=1 // pred_check_branch
      %384 = sbr.rel (0) target = $region49
    $region48: #{tpu_custom_call.1} parent=1 // pred_region
      %385 = dma.done [#allocation4], 128
    $region49: #{tpu_custom_call.1} parent=1 // pred_fallthru
      _
    %386 = vsyncpa [#allocation3], 1
    %387 = vsyncpa [#allocation6], 1
    %388 = vsyncpa [#allocation9], 1
    %389 = vsyncpa [#allocation4], 1

</llo_original>
